<compile_context>
chip_gen: v5e
topology: v5e:2x2
jax: 0.10.0
libtpu: 0.0.40
codegen_flags: <defaults>
</compile_context>

<pallas_src>
import functools

import jax
import jax.numpy as jnp
from jax.experimental import pallas as pl
from jax.experimental.pallas import tpu as pltpu

BN_EPS = 1e-5


# ----------------------------------------------------------------------------
# Pallas kernels
# ----------------------------------------------------------------------------
def fused_conv_bn_relu_kernel(p_ref, w_ref, gamma_ref, beta_ref, o_ref,
                              s1_ref, s2_ref, *, tm, m_true):
    # p_ref:     [TM, CKp]     bf16 im2col patch tile (grid over M-tiles)
    # w_ref:     [CKp, Cp]     bf16 spectral-normalized weight (grid-invariant)
    # gamma_ref: [1, Cp]       f32 BN gamma (grid-invariant)
    # beta_ref:  [1, Cp]       f32 BN beta  (grid-invariant)
    # o_ref:     [Mp, Cp]      f32 output, VMEM-resident across the whole grid
    # s1_ref/s2_ref: [1, Cp]   f32 scratch accumulators (sum, sum of squares)
    i = pl.program_id(0)

    @pl.when(i == 0)
    def _():
        s1_ref[...] = jnp.zeros_like(s1_ref)
        s2_ref[...] = jnp.zeros_like(s2_ref)

    y = jnp.dot(p_ref[...], w_ref[...], preferred_element_type=jnp.float32)
    row0 = pl.multiple_of(i * tm, tm)
    o_ref[pl.ds(row0, tm), :] = y
    s1_ref[...] += jnp.sum(y, axis=0, keepdims=True)
    s2_ref[...] += jnp.sum(y * y, axis=0, keepdims=True)

    @pl.when(i == pl.num_programs(0) - 1)
    def _():
        # Padded rows of the patches are zero, so the sums are exact; divide by
        # the TRUE number of conv outputs (training-mode / biased batch var).
        mean = s1_ref[...] / m_true
        var = jnp.maximum(s2_ref[...] / m_true - mean * mean, 0.0)
        scale = gamma_ref[...] * jax.lax.rsqrt(var + BN_EPS)
        shift = beta_ref[...] - mean * scale
        o_ref[...] = jnp.maximum(o_ref[...] * scale + shift, 0.0)


def conv_stats_kernel(p_ref, w_ref, y_ref, stats_ref):
    # p_ref:     [TM, CKp]   bf16 im2col patch tile
    # w_ref:     [CKp, Cp]   bf16 spectral-normalized weight (grid-invariant)
    # y_ref:     [TM, Cp]    f32 conv output tile (written back to HBM)
    # stats_ref: [1, 8, Cp]  f32 per-tile partial stats (row0 = sum, row1 = sum^2)
    y = jnp.dot(p_ref[...], w_ref[...], preferred_element_type=jnp.float32)
    y_ref[...] = y

    s1 = jnp.sum(y, axis=0, keepdims=True)        # [1, Cp]
    s2 = jnp.sum(y * y, axis=0, keepdims=True)    # [1, Cp]
    cp = stats_ref.shape[-1]
    row = jax.lax.broadcasted_iota(jnp.int32, (8, cp), 0)
    stats = jnp.where(row == 0, s1, jnp.where(row == 1, s2, 0.0))
    stats_ref[...] = stats.reshape(1, 8, cp)


def bn_relu_kernel(y_ref, scale_ref, shift_ref, o_ref):
    # y_ref: [TM, Cp] f32; scale/shift: [1, Cp] fused BN constants; o_ref: [TM, Cp]
    o_ref[...] = jnp.maximum(y_ref[...] * scale_ref[...] + shift_ref[...], 0.0)


# ----------------------------------------------------------------------------
# JAX-side glue
# ----------------------------------------------------------------------------
def _round_up(x, m):
    return (x + m - 1) // m * m


def _l2_normalize(v, eps=1e-12):
    return v / (jnp.sqrt(jnp.sum(v * v)) + eps)


def spectral_normalize_weight(w, u):
    """One power iteration (PyTorch spectral_norm default) on W viewed as [Cout, -1]."""
    cout = w.shape[0]
    w2d = w.reshape(cout, -1)
    v = _l2_normalize(w2d.T @ u)
    u_new = _l2_normalize(w2d @ v)
    sigma = jnp.dot(u_new, w2d @ v)
    return w / sigma, u_new


def _im2col(x, k, stride, pad):
    """x: [N, C, H, W] -> patches [N*Ho*Wo, C*k*k] with (C, kh, kw) flattening
    (C slowest), matching OIHW weight.reshape(Cout, C*k*k).  Built in NHWC order
    so the final reshape is a flatten, not a big 5-D transpose."""
    n, c, h, w = x.shape
    ho = (h + 2 * pad - k) // stride + 1
    wo = (w + 2 * pad - k) // stride + 1
    xp = jnp.pad(x, ((0, 0), (0, 0), (pad, pad), (pad, pad)))
    xp = jnp.transpose(xp, (0, 2, 3, 1))  # NHWC
    cols = []
    for i in range(k):
        for j in range(k):
            cols.append(xp[:, i:i + stride * ho:stride, j:j + stride * wo:stride, :])
    patches = jnp.stack(cols, axis=-1)                  # [N, Ho, Wo, C, k*k]
    patches = patches.reshape(n * ho * wo, c * k * k)   # row = n*Ho*Wo + oh*Wo + ow
    return patches, ho, wo
    # TODO(synk): for very large inputs, form patches inside the kernel from NHWC
    # row-tiles (memory_space=pl.ANY + manual DMA) to avoid the K^2-inflated
    # im2col HBM traffic.


def _choose_tm(m_rows, ckp, cp, tm_init=512, bytes_budget=20 * 1024 * 1024):
    """Pick a row tile whose double-buffered per-step footprint fits comfortably
    in scoped VMEM on every generation (v7x has only 64 MiB physical)."""
    tm = min(tm_init, _round_up(max(m_rows, 1), 8))
    tm = _round_up(tm, 8)
    while tm > 8:
        per_step = (2 * tm * ckp * 2       # bf16 patch tile, double-buffered
                    + 2 * ckp * cp * 2     # bf16 weight block
                    + 2 * tm * cp * 4      # f32 y writeback, double-buffered
                    + 2 * tm * cp * 4      # pass-2 read/write
                    + 2 * 8 * cp * 4)      # partial stats
        if per_step <= bytes_budget:
            break
        tm = max(8, _round_up(tm // 2, 8))
    return tm


def basic_layer_forward(x, weight, gamma, beta, u, ksize=4, dstep=2, padding=1,
                        tm=512):
    """x: [N, Cin, H, W]; weight: [Cout, Cin, K, K]; returns [N, Cout, Ho, Wo]."""
    n, cin, h, w = x.shape
    cout = weight.shape[0]
    ck = cin * ksize * ksize

    w_sn, _u_new = spectral_normalize_weight(weight, u)
    # TODO(synk): persist the updated power-iteration vector `_u_new` across calls
    # (PyTorch's spectral_norm updates the `u` buffer in place during forward).

    patches, ho, wo = _im2col(x, ksize, dstep, padding)   # [M, CK] f32
    m = patches.shape[0]

    # Lane-dense padding (128-wide stores / MXU contraction) + row-tile padding.
    ckp = _round_up(ck, 128)
    cp = _round_up(cout, 128)
    tm = _choose_tm(m, ckp, cp, tm_init=tm)
    m_pad = _round_up(m, tm)
    g = m_pad // tm

    patches_p = jnp.pad(patches, ((0, m_pad - m), (0, ckp - ck))).astype(jnp.bfloat16)
    w2d = jnp.pad(w_sn.reshape(cout, ck).T,
                  ((0, ckp - ck), (0, cp - cout))).astype(jnp.bfloat16)
    gamma_p = jnp.pad(gamma.astype(jnp.float32), (0, cp - cout)).reshape(1, cp)
    beta_p = jnp.pad(beta.astype(jnp.float32), (0, cp - cout)).reshape(1, cp)

    vmem_limit = 48 * 1024 * 1024

    # Decide whether the whole f32 activation fits comfortably in VMEM (counting
    # a conservative 2x for the resident output block plus the double-buffered
    # patch tiles and the weight block).
    out_bytes = m_pad * cp * 4
    fused_footprint = (2 * out_bytes
                       + 2 * tm * ckp * 2
                       + ckp * cp * 2
                       + 4 * cp * 4)
    use_fused = (out_bytes <= 12 * 1024 * 1024
                 and fused_footprint <= 36 * 1024 * 1024)

    if use_fused:
        # ---- single fused pass: matmul + stats + BN + ReLU, y never leaves VMEM.
        out_flat = pl.pallas_call(
            functools.partial(fused_conv_bn_relu_kernel, tm=tm, m_true=float(m)),
            out_shape=jax.ShapeDtypeStruct((m_pad, cp), jnp.float32),
            grid=(g,),
            in_specs=[
                pl.BlockSpec((tm, ckp), lambda i: (i, 0)),
                pl.BlockSpec((ckp, cp), lambda i: (0, 0)),
                pl.BlockSpec((1, cp), lambda i: (0, 0)),
                pl.BlockSpec((1, cp), lambda i: (0, 0)),
            ],
            out_specs=pl.BlockSpec((m_pad, cp), lambda i: (0, 0)),
            scratch_shapes=[pltpu.VMEM((1, cp), jnp.float32),
                            pltpu.VMEM((1, cp), jnp.float32)],
            compiler_params=pltpu.CompilerParams(
                dimension_semantics=("arbitrary",),
                vmem_limit_bytes=vmem_limit),
            cost_estimate=pl.CostEstimate(
                flops=2 * m_pad * ckp * cp + 5 * m_pad * cp,
                bytes_accessed=(m_pad * ckp * 2 + ckp * cp * 2
                                + m_pad * cp * 4 + 4 * cp * 4),
                transcendentals=0),
        )(patches_p, w2d, gamma_p, beta_p)
    else:
        # ---- pass 1: tiled MXU matmul + per-tile BN partial statistics --------
        y_flat, stats = pl.pallas_call(
            conv_stats_kernel,
            out_shape=(jax.ShapeDtypeStruct((m_pad, cp), jnp.float32),
                       jax.ShapeDtypeStruct((g, 8, cp), jnp.float32)),
            grid=(g,),
            in_specs=[
                pl.BlockSpec((tm, ckp), lambda i: (i, 0)),
                pl.BlockSpec((ckp, cp), lambda i: (0, 0)),
            ],
            out_specs=(
                pl.BlockSpec((tm, cp), lambda i: (i, 0)),
                pl.BlockSpec((1, 8, cp), lambda i: (i, 0, 0)),
            ),
            compiler_params=pltpu.CompilerParams(
                dimension_semantics=("parallel",),
                vmem_limit_bytes=vmem_limit),
            cost_estimate=pl.CostEstimate(
                flops=2 * m_pad * ckp * cp,
                bytes_accessed=(m_pad * ckp * 2 + ckp * cp * 2
                                + m_pad * cp * 4 + g * 8 * cp * 4),
                transcendentals=0),
        )(patches_p, w2d)

        # ---- tiny per-channel glue: batch stats + BN affine -> fused scale/shift.
        # Padded rows contribute exact zeros to the sums; divide by the TRUE m.
        sums = jnp.sum(stats, axis=0)                       # [8, cp]
        mean = sums[0] / m
        var = jnp.maximum(sums[1] / m - mean * mean, 0.0)   # biased (training BN)
        s_vec = gamma_p[0] * jax.lax.rsqrt(var + BN_EPS)
        b_vec = beta_p[0] - mean * s_vec
        scale = s_vec.reshape(1, cp)
        shift = b_vec.reshape(1, cp)

        # ---- pass 2: normalize + affine + ReLU with lane-dense stores ---------
        out_flat = pl.pallas_call(
            bn_relu_kernel,
            out_shape=jax.ShapeDtypeStruct((m_pad, cp), jnp.float32),
            grid=(g,),
            in_specs=[
                pl.BlockSpec((tm, cp), lambda i: (i, 0)),
                pl.BlockSpec((1, cp), lambda i: (0, 0)),
                pl.BlockSpec((1, cp), lambda i: (0, 0)),
            ],
            out_specs=pl.BlockSpec((tm, cp), lambda i: (i, 0)),
            compiler_params=pltpu.CompilerParams(
                dimension_semantics=("parallel",),
                vmem_limit_bytes=vmem_limit),
            cost_estimate=pl.CostEstimate(
                flops=3 * m_pad * cp,
                bytes_accessed=2 * m_pad * cp * 4 + 4 * cp * 4,
                transcendentals=0),
        )(y_flat, scale, shift)

    # [N*Ho*Wo, Cp] -> [N, Cout, Ho, Wo] (PyTorch layout).
    out = out_flat[:m, :cout].reshape(n, ho, wo, cout).transpose(0, 3, 1, 2)
    # TODO(synk): in a real pipeline keep the output NHWC (or write NCHW tiles
    # directly from the kernel) to avoid this extra HBM layout round-trip.
    return out


# ----------------------------------------------------------------------------
# Pure-JAX reference (same bf16-input / f32-accumulate precision as the kernel)
# ----------------------------------------------------------------------------
def reference_forward(x, weight, gamma, beta, u, ksize=4, dstep=2, padding=1):
    w_sn, _ = spectral_normalize_weight(weight, u)
    y = jax.lax.conv_general_dilated(
        x.astype(jnp.bfloat16), w_sn.astype(jnp.bfloat16),
        window_strides=(dstep, dstep),
        padding=[(padding, padding), (padding, padding)],
        dimension_numbers=("NCHW", "OIHW", "NCHW"),
        preferred_element_type=jnp.float32)
    mean = jnp.mean(y, axis=(0, 2, 3), keepdims=True)
    var = jnp.var(y, axis=(0, 2, 3), keepdims=True)   # biased, matches BN training
    y = (y - mean) * jax.lax.rsqrt(var + BN_EPS)
    y = y * gamma.reshape(1, -1, 1, 1) + beta.reshape(1, -1, 1, 1)
    return jnp.maximum(y, 0.0)


if __name__ == "__main__":
    key = jax.random.PRNGKey(0)
    k_x, k_w, k_u = jax.random.split(key, 3)

    N, CIN, H, W = 2, 4, 16, 16
    COUT, KSIZE, DSTEP, PAD = 8, 4, 2, 1

    x = jax.random.normal(k_x, (N, CIN, H, W), dtype=jnp.float32)
    fan_in = CIN * KSIZE * KSIZE
    weight = jax.random.normal(k_w, (COUT, CIN, KSIZE, KSIZE), dtype=jnp.float32) \
        * (2.0 / fan_in) ** 0.5
    u = _l2_normalize(jax.random.normal(k_u, (COUT,), dtype=jnp.float32))
    gamma = jnp.ones((COUT,), dtype=jnp.float32)   # BatchNorm2d default init
    beta = jnp.zeros((COUT,), dtype=jnp.float32)

    out = basic_layer_forward(x, weight, gamma, beta, u, KSIZE, DSTEP, PAD)
    out = jax.block_until_ready(out)

    ref = reference_forward(x, weight, gamma, beta, u, KSIZE, DSTEP, PAD)
    assert out.shape == (N, COUT, 8, 8), out.shape
    max_err = float(jnp.max(jnp.abs(out - ref)))
    assert jnp.allclose(out, ref, atol=2e-3, rtol=2e-3), max_err

    print("KERNEL_OK")
</pallas_src>

<mosaic_0001>
module attributes {stable_mosaic.version = 11 : i64} {
  func.func @fused_conv_bn_relu_kernel(%arg0: i32, %arg1: memref<128x128xbf16, #tpu.memory_space<vmem>>, %arg2: memref<128x128xbf16, #tpu.memory_space<vmem>>, %arg3: memref<1x128xf32, #tpu.memory_space<vmem>>, %arg4: memref<1x128xf32, #tpu.memory_space<vmem>>, %arg5: memref<128x128xf32, #tpu.memory_space<vmem>>, %arg6: memref<1x128xf32, #tpu.memory_space<vmem>>, %arg7: memref<1x128xf32, #tpu.memory_space<vmem>>) attributes {dimension_semantics = [#tpu.dimension_semantics<arbitrary>], iteration_bounds = array<i64: 1>, scalar_prefetch = 0 : i64, scratch_operands = 2 : i64, tpu.core_type = #tpu.core_type<tc>, window_params = [{transform_indices = @transform_0, window_bounds = array<i64: 128, 128>}, {pipeline_mode = #tpu.pipeline_mode<synchronous>, transform_indices = @transform_1, window_bounds = array<i64: 128, 128>}, {pipeline_mode = #tpu.pipeline_mode<synchronous>, transform_indices = @transform_2, window_bounds = array<i64: 1, 128>}, {pipeline_mode = #tpu.pipeline_mode<synchronous>, transform_indices = @transform_3, window_bounds = array<i64: 1, 128>}, {pipeline_mode = #tpu.pipeline_mode<synchronous>, transform_indices = @transform_4, window_bounds = array<i64: 128, 128>}]} {
    %c0_i32 = arith.constant 0 : i32
    %0 = arith.cmpi eq, %arg0, %c0_i32 : i32
    %1 = arith.extui %0 : i1 to i32
    %c0_i32_0 = arith.constant 0 : i32
    %2 = arith.cmpi ne, %1, %c0_i32_0 : i32
    scf.if %2 {
      %cst_17 = arith.constant 0.000000e+00 : f32
      %24 = vector.broadcast %cst_17 : f32 to vector<1x128xf32>
      %c0_18 = arith.constant 0 : index
      %c0_19 = arith.constant 0 : index
      %25 = vector.load %arg6[%c0_18, %c0_19] : memref<1x128xf32, #tpu.memory_space<vmem>>, vector<1x128xf32>
      tpu.vector_store %arg6[%c0_18, %c0_19], %24 {strides = array<i32>} : memref<1x128xf32, #tpu.memory_space<vmem>>, vector<1x128xf32>,
      %cst_20 = arith.constant 0.000000e+00 : f32
      %26 = vector.broadcast %cst_20 : f32 to vector<1x128xf32>
      %c0_21 = arith.constant 0 : index
      %c0_22 = arith.constant 0 : index
      %27 = vector.load %arg7[%c0_21, %c0_22] : memref<1x128xf32, #tpu.memory_space<vmem>>, vector<1x128xf32>
      tpu.vector_store %arg7[%c0_21, %c0_22], %26 {strides = array<i32>} : memref<1x128xf32, #tpu.memory_space<vmem>>, vector<1x128xf32>,
    } else {
    }
    %c0 = arith.constant 0 : index
    %c0_1 = arith.constant 0 : index
    %3 = vector.load %arg1[%c0, %c0_1] : memref<128x128xbf16, #tpu.memory_space<vmem>>, vector<128x128xbf16>
    %c0_2 = arith.constant 0 : index
    %c0_3 = arith.constant 0 : index
    %4 = vector.load %arg2[%c0_2, %c0_3] : memref<128x128xbf16, #tpu.memory_space<vmem>>, vector<128x128xbf16>
    %cst = arith.constant dense<0.000000e+00> : vector<128x128xf32>
    %5 = tpu.matmul %3, %4, %cst {dimension_numbers = #tpu.dot_dimension_numbers<[1], [0], [0], [1], [0, 0, 1, 1], [], []>} : vector<128x128xbf16>, vector<128x128xbf16>, vector<128x128xf32> -> vector<128x128xf32>
    %c128_i32 = arith.constant 128 : i32
    %6 = arith.muli %arg0, %c128_i32 : i32
    %7 = tpu.assume_multiple %6, 128 : i32
    %8 = arith.index_cast %7 : i32 to index
    %c0_4 = arith.constant 0 : index
    %9 = vector.load %arg5[%8, %c0_4] : memref<128x128xf32, #tpu.memory_space<vmem>>, vector<128x128xf32>
    tpu.vector_store %arg5[%8, %c0_4], %5 {strides = array<i32>} : memref<128x128xf32, #tpu.memory_space<vmem>>, vector<128x128xf32>,
    %c0_5 = arith.constant 0 : index
    %c0_6 = arith.constant 0 : index
    %10 = vector.load %arg6[%c0_5, %c0_6] : memref<1x128xf32, #tpu.memory_space<vmem>>, vector<1x128xf32>
    %cst_7 = arith.constant dense<0.000000e+00> : vector<128xf32>
    %11 = vector.multi_reduction <add>, %5, %cst_7 [0] : vector<128x128xf32> to vector<128xf32>
    %12 = vector.shape_cast %11 : vector<128xf32> to vector<1x128xf32>
    %13 = arith.addf %10, %12 : vector<1x128xf32>
    %c0_8 = arith.constant 0 : index
    %c0_9 = arith.constant 0 : index
    %14 = vector.load %arg6[%c0_8, %c0_9] : memref<1x128xf32, #tpu.memory_space<vmem>>, vector<1x128xf32>
    tpu.vector_store %arg6[%c0_8, %c0_9], %13 {strides = array<i32>} : memref<1x128xf32, #tpu.memory_space<vmem>>, vector<1x128xf32>,
    %c0_10 = arith.constant 0 : index
    %c0_11 = arith.constant 0 : index
    %15 = vector.load %arg7[%c0_10, %c0_11] : memref<1x128xf32, #tpu.memory_space<vmem>>, vector<1x128xf32>
    %16 = arith.mulf %5, %5 : vector<128x128xf32>
    %cst_12 = arith.constant dense<0.000000e+00> : vector<128xf32>
    %17 = vector.multi_reduction <add>, %16, %cst_12 [0] : vector<128x128xf32> to vector<128xf32>
    %18 = vector.shape_cast %17 : vector<128xf32> to vector<1x128xf32>
    %19 = arith.addf %15, %18 : vector<1x128xf32>
    %c0_13 = arith.constant 0 : index
    %c0_14 = arith.constant 0 : index
    %20 = vector.load %arg7[%c0_13, %c0_14] : memref<1x128xf32, #tpu.memory_space<vmem>>, vector<1x128xf32>
    tpu.vector_store %arg7[%c0_13, %c0_14], %19 {strides = array<i32>} : memref<1x128xf32, #tpu.memory_space<vmem>>, vector<1x128xf32>,
    %c0_i32_15 = arith.constant 0 : i32
    %21 = arith.cmpi eq, %arg0, %c0_i32_15 : i32
    %22 = arith.extui %21 : i1 to i32
    %c0_i32_16 = arith.constant 0 : i32
    %23 = arith.cmpi ne, %22, %c0_i32_16 : i32
    scf.if %23 {
      %c0_17 = arith.constant 0 : index
      %c0_18 = arith.constant 0 : index
      %24 = vector.load %arg6[%c0_17, %c0_18] : memref<1x128xf32, #tpu.memory_space<vmem>>, vector<1x128xf32>
      %cst_19 = arith.constant 1.280000e+02 : f32
      %25 = vector.broadcast %cst_19 : f32 to vector<1x128xf32>
      %26 = arith.divf %24, %25 : vector<1x128xf32>
      %c0_20 = arith.constant 0 : index
      %c0_21 = arith.constant 0 : index
      %27 = vector.load %arg7[%c0_20, %c0_21] : memref<1x128xf32, #tpu.memory_space<vmem>>, vector<1x128xf32>
      %cst_22 = arith.constant 1.280000e+02 : f32
      %28 = vector.broadcast %cst_22 : f32 to vector<1x128xf32>
      %29 = arith.divf %27, %28 : vector<1x128xf32>
      %30 = arith.mulf %26, %26 : vector<1x128xf32>
      %31 = arith.subf %29, %30 : vector<1x128xf32>
      %cst_23 = arith.constant 0.000000e+00 : f32
      %32 = vector.broadcast %cst_23 : f32 to vector<1x128xf32>
      %33 = arith.maximumf %31, %32 : vector<1x128xf32>
      %c0_24 = arith.constant 0 : index
      %c0_25 = arith.constant 0 : index
      %34 = vector.load %arg3[%c0_24, %c0_25] : memref<1x128xf32, #tpu.memory_space<vmem>>, vector<1x128xf32>
      %cst_26 = arith.constant 9.99999974E-6 : f32
      %35 = vector.broadcast %cst_26 : f32 to vector<1x128xf32>
      %36 = arith.addf %33, %35 : vector<1x128xf32>
      %37 = math.rsqrt %36 : vector<1x128xf32>
      %38 = arith.mulf %34, %37 : vector<1x128xf32>
      %c0_27 = arith.constant 0 : index
      %c0_28 = arith.constant 0 : index
      %39 = vector.load %arg4[%c0_27, %c0_28] : memref<1x128xf32, #tpu.memory_space<vmem>>, vector<1x128xf32>
      %40 = arith.mulf %26, %38 : vector<1x128xf32>
      %41 = arith.subf %39, %40 : vector<1x128xf32>
      %c0_29 = arith.constant 0 : index
      %c0_30 = arith.constant 0 : index
      %42 = vector.load %arg5[%c0_29, %c0_30] : memref<128x128xf32, #tpu.memory_space<vmem>>, vector<128x128xf32>
      %43 = vector.broadcast %38 : vector<1x128xf32> to vector<128x128xf32>
      %44 = arith.mulf %42, %43 : vector<128x128xf32>
      %45 = vector.broadcast %41 : vector<1x128xf32> to vector<128x128xf32>
      %46 = arith.addf %44, %45 : vector<128x128xf32>
      %cst_31 = arith.constant 0.000000e+00 : f32
      %47 = vector.broadcast %cst_31 : f32 to vector<128x128xf32>
      %48 = arith.maximumf %46, %47 : vector<128x128xf32>
      %c0_32 = arith.constant 0 : index
      %c0_33 = arith.constant 0 : index
      %49 = vector.load %arg5[%c0_32, %c0_33] : memref<128x128xf32, #tpu.memory_space<vmem>>, vector<128x128xf32>
      tpu.vector_store %arg5[%c0_32, %c0_33], %48 {strides = array<i32>} : memref<128x128xf32, #tpu.memory_space<vmem>>, vector<128x128xf32>,
    } else {
    }
    return
  }
  func.func @transform_0(%arg0: i32) -> (i32, i32) {
    %c0_i32 = arith.constant 0 : i32
    %c0_i32_0 = arith.constant 0 : i32
    return %arg0, %c0_i32 : i32, i32
  }
  func.func @transform_1(%arg0: i32) -> (i32, i32) {
    %c0_i32 = arith.constant 0 : i32
    %c0_i32_0 = arith.constant 0 : i32
    %c0_i32_1 = arith.constant 0 : i32
    return %c0_i32, %c0_i32_0 : i32, i32
  }
  func.func @transform_2(%arg0: i32) -> (i32, i32) {
    %c0_i32 = arith.constant 0 : i32
    %c0_i32_0 = arith.constant 0 : i32
    %c0_i32_1 = arith.constant 0 : i32
    return %c0_i32, %c0_i32_0 : i32, i32
  }
  func.func @transform_3(%arg0: i32) -> (i32, i32) {
    %c0_i32 = arith.constant 0 : i32
    %c0_i32_0 = arith.constant 0 : i32
    %c0_i32_1 = arith.constant 0 : i32
    return %c0_i32, %c0_i32_0 : i32, i32
  }
  func.func @transform_4(%arg0: i32) -> (i32, i32) {
    %c0_i32 = arith.constant 0 : i32
    %c0_i32_0 = arith.constant 0 : i32
    %c0_i32_1 = arith.constant 0 : i32
    return %c0_i32, %c0_i32_0 : i32, i32
  }
}

</mosaic_0001>

<llo_original>
// kernel: tpu_custom_call.1
$region0: #{tpu_custom_call.1}
  #allocation0 [shape = 'u32[]', space=smem, size = 0x4, offset = 0x4, fixed_abs, tag = 'smem constant byte address 0x4 - core index']
  #allocation1 [shape = 'u32[72,128]{1,0:T(1,128)}', space=vmem, size = 0x9000, scoped, tag = 'internal scratch']
  #allocation2 [shape = 'f32[1,128]{1,0:T(1,128)}', space=vmem, size = 0x200, scoped, tag = 'scratch operand']
  #allocation3 [shape = 'f32[1,128]{1,0:T(1,128)}', space=vmem, size = 0x200, scoped, tag = 'scratch operand']
  %s0 = inlined_call_operand.hbm [shape: bf16[128,128], index: 0, kind: input, shape index: {}]
  %s1 = inlined_call_operand.hbm [shape: bf16[128,128], index: 1, kind: input, shape index: {}]
  %s2 = inlined_call_operand.vmem [shape: f32[1,128], index: 2, kind: input, shape index: {}]
  %s3 = inlined_call_operand.vmem [shape: f32[1,128], index: 3, kind: input, shape index: {}]
  %s4 = inlined_call_operand.hbm [shape: f32[128,128], index: 4, kind: output, shape index: {}]
  %s5 = sld [smem:[#allocation0]]
  $region42: #{tpu_custom_call.1} parent=0
    _
  %s7 = ssub.s32 1, %s5
  %s8 = scalar_select 0, %s7, %s5
  $region1: #{tpu_custom_call.1} parent=0
    #allocation4 [shape = 'u8[32768]{0}', space=vmem, size = 0x8000, scoped, tag = 'input window, operand 0, single buffered']
    #allocation5 [shape = 's32[1]{0}', space=sflag, size = 0x4, scoped, tag = 'scoped memory for tpu_custom_call.1']
    #allocation6 [shape = 's32[1]{0}', space=sflag, size = 0x4, scoped, tag = 'scoped memory for tpu_custom_call.1']
    #allocation7 [shape = 'u8[32768]{0}', space=vmem, size = 0x8000, scoped, tag = 'input window, operand 1, single buffered']
    #allocation8 [shape = 's32[1]{0}', space=sflag, size = 0x4, scoped, tag = 'scoped memory for tpu_custom_call.1']
    #allocation9 [shape = 'u8[65536]{0}', space=vmem, size = 0x10000, scoped, tag = 'output window, operand 0, single buffered']
    %9 = vsyncpa [#allocation5], 0
    %10 = vsyncpa [#allocation8], 0
    %11 = vsyncpa [#allocation6], 0
    // Predicated region
    $region2: #{tpu_custom_call.1} parent=1 // pred_check
      _
    $region3: #{tpu_custom_call.1} parent=1 // pred_check_branch
      %13 = sbr.rel (0) target = $region5
    $region4: #{tpu_custom_call.1} parent=1 // pred_region
      %15 = vsyncadd [#allocation5], 0
      %s16 = sshll.u32 %s0, 4
      %s17 = int_to_ptr.hbm [resolvable:$true] %s16
      %s18 = sshll.u32 [#allocation4], 4
      %s19 = int_to_ptr.vmem [resolvable:$true] %s18
      %24 = dma.hbm_to_vmem [thread:$0]  %s17, 1024, %s19, [#allocation5], 64, 64, 4
    $region5: #{tpu_custom_call.1} parent=1 // pred_fallthru
      _
    // Predicated region
    $region6: #{tpu_custom_call.1} parent=1 // pred_check
      _
    $region7: #{tpu_custom_call.1} parent=1 // pred_check_branch
      %26 = sbr.rel (0) target = $region9
    $region8: #{tpu_custom_call.1} parent=1 // pred_region
      %28 = vsyncadd [#allocation8], 0
      %s29 = sshll.u32 %s1, 4
      %s30 = int_to_ptr.hbm [resolvable:$true] %s29
      %s31 = sshll.u32 [#allocation7], 4
      %s32 = int_to_ptr.vmem [resolvable:$true] %s31
      %37 = dma.hbm_to_vmem [thread:$0]  %s30, 1024, %s32, [#allocation8], 64, 64, 4
    $region9: #{tpu_custom_call.1} parent=1 // pred_fallthru
      _
    // Predicated region
    $region10: #{tpu_custom_call.1} parent=1 // pred_check
      _
    $region11: #{tpu_custom_call.1} parent=1 // pred_check_branch
      %39 = sbr.rel (0) target = $region13
    $region12: #{tpu_custom_call.1} parent=1 // pred_region
      _
    $region13: #{tpu_custom_call.1} parent=1 // pred_fallthru
      _
    // Predicated region
    $region14: #{tpu_custom_call.1} parent=1 // pred_check
      _
    $region15: #{tpu_custom_call.1} parent=1 // pred_check_branch
      %41 = sbr.rel (0) target = $region17
    $region16: #{tpu_custom_call.1} parent=1 // pred_region
      _
    $region17: #{tpu_custom_call.1} parent=1 // pred_fallthru
      _
    // Predicated region
    $region18: #{tpu_custom_call.1} parent=1 // pred_check
      _
    $region19: #{tpu_custom_call.1} parent=1 // pred_check_branch
      %43 = sbr.rel (0) target = $region21
    $region20: #{tpu_custom_call.1} parent=1 // pred_region
      %45 = dma.done [#allocation5], 1024
    $region21: #{tpu_custom_call.1} parent=1 // pred_fallthru
      _
    // Predicated region
    $region22: #{tpu_custom_call.1} parent=1 // pred_check
      _
    $region23: #{tpu_custom_call.1} parent=1 // pred_check_branch
      %47 = sbr.rel (0) target = $region25
    $region24: #{tpu_custom_call.1} parent=1 // pred_region
      %49 = dma.done [#allocation8], 1024
    $region25: #{tpu_custom_call.1} parent=1 // pred_fallthru
      _
    %p50 = scmp.eq.s32.totalorder 0, 0
    // Predicated region
    $region26: #{tpu_custom_call.1} parent=1 // pred_check
      %p51 = pneg %p50
    $region27: #{tpu_custom_call.1} parent=1 // pred_check_branch
      %53 = sbr.rel (%p51) target = $region29
    $region28: #{tpu_custom_call.1} parent=1 // pred_region
      %54 = vst [vmem:[#allocation2] sm:$0x1] 0.0
      %55 = vst [vmem:[#allocation3] sm:$0x1] 0.0
    $region29: #{tpu_custom_call.1} parent=1 // pred_fallthru
      _
    %v56 = vld [vmem:[#allocation4] sm:$0xf]
    %v57 = vld [vmem:[#allocation4 + $0x4] sm:$0xf]
    %v58 = vld [vmem:[#allocation4 + $0x8] sm:$0xf]
    %v59 = vld [vmem:[#allocation4 + $0xc] sm:$0xf]
    %v60 = vld [vmem:[#allocation4 + $0x10] sm:$0xf]
    %v61 = vld [vmem:[#allocation4 + $0x14] sm:$0xf]
    %v62 = vld [vmem:[#allocation4 + $0x18] sm:$0xf]
    %v63 = vld [vmem:[#allocation4 + $0x1c] sm:$0xf]
    %v64 = vld [vmem:[#allocation4 + $0x20] sm:$0xf]
    %v65 = vld [vmem:[#allocation4 + $0x24] sm:$0xf]
    %v66 = vld [vmem:[#allocation4 + $0x28] sm:$0xf]
    %v67 = vld [vmem:[#allocation4 + $0x2c] sm:$0xf]
    %v68 = vld [vmem:[#allocation4 + $0x30] sm:$0xf]
    %v69 = vld [vmem:[#allocation4 + $0x34] sm:$0xf]
    %v70 = vld [vmem:[#allocation4 + $0x38] sm:$0xf]
    %v71 = vld [vmem:[#allocation4 + $0x3c] sm:$0xf]
    %v72 = vld [vmem:[#allocation7] sm:$0xf]
    %v73 = vld [vmem:[#allocation7 + $0x4] sm:$0xf]
    %v74 = vld [vmem:[#allocation7 + $0x8] sm:$0xf]
    %v75 = vld [vmem:[#allocation7 + $0xc] sm:$0xf]
    %v76 = vld [vmem:[#allocation7 + $0x10] sm:$0xf]
    %v77 = vld [vmem:[#allocation7 + $0x14] sm:$0xf]
    %v78 = vld [vmem:[#allocation7 + $0x18] sm:$0xf]
    %v79 = vld [vmem:[#allocation7 + $0x1c] sm:$0xf]
    %v80 = vld [vmem:[#allocation7 + $0x20] sm:$0xf]
    %v81 = vld [vmem:[#allocation7 + $0x24] sm:$0xf]
    %v82 = vld [vmem:[#allocation7 + $0x28] sm:$0xf]
    %v83 = vld [vmem:[#allocation7 + $0x2c] sm:$0xf]
    %v84 = vld [vmem:[#allocation7 + $0x30] sm:$0xf]
    %v85 = vld [vmem:[#allocation7 + $0x34] sm:$0xf]
    %v86 = vld [vmem:[#allocation7 + $0x38] sm:$0xf]
    %v87 = vld [vmem:[#allocation7 + $0x3c] sm:$0xf]
    %v104 = vunpack.c.l.b16 %v56
    %v105 = vunpack.c.l.b16 %v57
    %v106 = vunpack.c.l.b16 %v58
    %v107 = vunpack.c.l.b16 %v59
    %v108 = vunpack.c.l.b16 %v60
    %v109 = vunpack.c.l.b16 %v61
    %v110 = vunpack.c.l.b16 %v62
    %v111 = vunpack.c.l.b16 %v63
    %v112 = vunpack.c.l.b16 %v64
    %v113 = vunpack.c.l.b16 %v65
    %v114 = vunpack.c.l.b16 %v66
    %v115 = vunpack.c.l.b16 %v67
    %v116 = vunpack.c.l.b16 %v68
    %v117 = vunpack.c.l.b16 %v69
    %v118 = vunpack.c.l.b16 %v70
    %v119 = vunpack.c.l.b16 %v71
    %v120 = vpack.c.b16 %v105, %v104
    %v121 = vpack.c.b16 %v107, %v106
    %v122 = vpack.c.b16 %v109, %v108
    %v123 = vpack.c.b16 %v111, %v110
    %v124 = vpack.c.b16 %v113, %v112
    %v125 = vpack.c.b16 %v115, %v114
    %v126 = vpack.c.b16 %v117, %v116
    %v127 = vpack.c.b16 %v119, %v118
    %v152 = vunpack.c.l.b16 %v72
    %v153 = vunpack.c.l.b16 %v73
    %v154 = vunpack.c.l.b16 %v74
    %v155 = vunpack.c.l.b16 %v75
    %v156 = vunpack.c.l.b16 %v76
    %v157 = vunpack.c.l.b16 %v77
    %v158 = vunpack.c.l.b16 %v78
    %v159 = vunpack.c.l.b16 %v79
    %v160 = vunpack.c.l.b16 %v80
    %v161 = vunpack.c.l.b16 %v81
    %v162 = vunpack.c.l.b16 %v82
    %v163 = vunpack.c.l.b16 %v83
    %v164 = vunpack.c.l.b16 %v84
    %v165 = vunpack.c.l.b16 %v85
    %v166 = vunpack.c.l.b16 %v86
    %v167 = vunpack.c.l.b16 %v87
    %v168 = vpack.c.b16 %v153, %v152
    %v169 = vpack.c.b16 %v155, %v154
    %v170 = vpack.c.b16 %v157, %v156
    %v171 = vpack.c.b16 %v159, %v158
    %v172 = vpack.c.b16 %v161, %v160
    %v173 = vpack.c.b16 %v163, %v162
    %v174 = vpack.c.b16 %v165, %v164
    %v175 = vpack.c.b16 %v167, %v166
    %184 = vmatpush.bf16.msra.mxu0 %v175
    %185 = vmatpush.bf16.msra.mxu0 %v174
    %186 = vmatpush.bf16.msra.mxu0 %v173
    %187 = vmatpush.bf16.msra.mxu0 %v172
    %188 = vmatpush.bf16.msra.mxu0 %v171
    %189 = vmatpush.bf16.msra.mxu0 %v170
    %190 = vmatpush.bf16.msra.mxu0 %v169
    %191 = vmatpush.bf16.msra.mxu0 %v168
    %192 = vmatmul.bf16.gmra.mxu0 %v120
    %v193 = vpop.f32.mrf.mxu0
    %v194 = vadd.f32 0.0, %v193
    %v195 = vpop.f32.mrf.mxu0
    %v196 = vadd.f32 0.0, %v195
    %197 = vmatmul.bf16.gmra.mxu0 %v121
    %v198 = vpop.f32.mrf.mxu0
    %v199 = vadd.f32 0.0, %v198
    %v200 = vpop.f32.mrf.mxu0
    %v201 = vadd.f32 0.0, %v200
    %202 = vmatmul.bf16.gmra.mxu0 %v122
    %v203 = vpop.f32.mrf.mxu0
    %v204 = vadd.f32 0.0, %v203
    %v205 = vpop.f32.mrf.mxu0
    %v206 = vadd.f32 0.0, %v205
    %207 = vmatmul.bf16.gmra.mxu0 %v123
    %v208 = vpop.f32.mrf.mxu0
    %v209 = vadd.f32 0.0, %v208
    %v210 = vpop.f32.mrf.mxu0
    %v211 = vadd.f32 0.0, %v210
    %212 = vmatmul.bf16.gmra.mxu0 %v124
    %v213 = vpop.f32.mrf.mxu0
    %v214 = vadd.f32 0.0, %v213
    %v215 = vpop.f32.mrf.mxu0
    %v216 = vadd.f32 0.0, %v215
    %217 = vmatmul.bf16.gmra.mxu0 %v125
    %v218 = vpop.f32.mrf.mxu0
    %v219 = vadd.f32 0.0, %v218
    %v220 = vpop.f32.mrf.mxu0
    %v221 = vadd.f32 0.0, %v220
    %222 = vmatmul.bf16.gmra.mxu0 %v126
    %v223 = vpop.f32.mrf.mxu0
    %v224 = vadd.f32 0.0, %v223
    %v225 = vpop.f32.mrf.mxu0
    %v226 = vadd.f32 0.0, %v225
    %227 = vmatmul.bf16.gmra.mxu0 %v127
    %v228 = vpop.f32.mrf.mxu0
    %v229 = vadd.f32 0.0, %v228
    %v230 = vpop.f32.mrf.mxu0
    %v231 = vadd.f32 0.0, %v230
    %232 = vdwg.mxu0
    %s233 = smul.u32 0, 128
    %s234 = scalar_lea.vmem [#allocation9], %s233
    %235 = vst [vmem:[%s234] sm:$0xff] %v194
    %236 = vst [vmem:[%s234 + $0x8] sm:$0xff] %v196
    %237 = vst [vmem:[%s234 + $0x10] sm:$0xff] %v199
    %238 = vst [vmem:[%s234 + $0x18] sm:$0xff] %v201
    %239 = vst [vmem:[%s234 + $0x20] sm:$0xff] %v204
    %240 = vst [vmem:[%s234 + $0x28] sm:$0xff] %v206
    %241 = vst [vmem:[%s234 + $0x30] sm:$0xff] %v209
    %242 = vst [vmem:[%s234 + $0x38] sm:$0xff] %v211
    %243 = vst [vmem:[%s234 + $0x40] sm:$0xff] %v214
    %244 = vst [vmem:[%s234 + $0x48] sm:$0xff] %v216
    %245 = vst [vmem:[%s234 + $0x50] sm:$0xff] %v219
    %246 = vst [vmem:[%s234 + $0x58] sm:$0xff] %v221
    %247 = vst [vmem:[%s234 + $0x60] sm:$0xff] %v224
    %248 = vst [vmem:[%s234 + $0x68] sm:$0xff] %v226
    %249 = vst [vmem:[%s234 + $0x70] sm:$0xff] %v229
    %250 = vst [vmem:[%s234 + $0x78] sm:$0xff] %v231
    %v251 = vld [vmem:[#allocation2] sm:$0x1]
    %v252 = vadd.f32 %v194, %v196
    %v253 = vadd.f32 %v252, %v199
    %v254 = vadd.f32 %v253, %v201
    %v255 = vadd.f32 %v254, %v204
    %v256 = vadd.f32 %v255, %v206
    %v257 = vadd.f32 %v256, %v209
    %v258 = vadd.f32 %v257, %v211
    %v259 = vadd.f32 %v258, %v214
    %v260 = vadd.f32 %v259, %v216
    %v261 = vadd.f32 %v260, %v219
    %v262 = vadd.f32 %v261, %v221
    %v263 = vadd.f32 %v262, %v224
    %v264 = vadd.f32 %v263, %v226
    %v265 = vadd.f32 %v264, %v229
    %v266 = vadd.f32 %v265, %v231
    %v267 = vrot.slane %v266, 4
    %v268 = vadd.f32 %v266, %v267
    %v269 = vrot.slane %v268, 2
    %v270 = vadd.f32 %v268, %v269
    %v271 = vrot.slane %v270, 1
    %v272 = vadd.f32 %v270, %v271
    %v273 = vadd.f32 %v251, %v272
    %274 = vst [vmem:[#allocation2] sm:$0x1] %v273
    %v275 = vld [vmem:[#allocation3] sm:$0x1]
    %v276 = vmul.f32 %v194, %v194
    %v277 = vmul.f32 %v196, %v196
    %v278 = vmul.f32 %v199, %v199
    %v279 = vmul.f32 %v201, %v201
    %v280 = vmul.f32 %v204, %v204
    %v281 = vmul.f32 %v206, %v206
    %v282 = vmul.f32 %v209, %v209
    %v283 = vmul.f32 %v211, %v211
    %v284 = vmul.f32 %v214, %v214
    %v285 = vmul.f32 %v216, %v216
    %v286 = vmul.f32 %v219, %v219
    %v287 = vmul.f32 %v221, %v221
    %v288 = vmul.f32 %v224, %v224
    %v289 = vmul.f32 %v226, %v226
    %v290 = vmul.f32 %v229, %v229
    %v291 = vmul.f32 %v231, %v231
    %v292 = vadd.f32 %v276, %v277
    %v293 = vadd.f32 %v292, %v278
    %v294 = vadd.f32 %v293, %v279
    %v295 = vadd.f32 %v294, %v280
    %v296 = vadd.f32 %v295, %v281
    %v297 = vadd.f32 %v296, %v282
    %v298 = vadd.f32 %v297, %v283
    %v299 = vadd.f32 %v298, %v284
    %v300 = vadd.f32 %v299, %v285
    %v301 = vadd.f32 %v300, %v286
    %v302 = vadd.f32 %v301, %v287
    %v303 = vadd.f32 %v302, %v288
    %v304 = vadd.f32 %v303, %v289
    %v305 = vadd.f32 %v304, %v290
    %v306 = vadd.f32 %v305, %v291
    %v307 = vrot.slane %v306, 4
    %v308 = vadd.f32 %v306, %v307
    %v309 = vrot.slane %v308, 2
    %v310 = vadd.f32 %v308, %v309
    %v311 = vrot.slane %v310, 1
    %v312 = vadd.f32 %v310, %v311
    %v313 = vadd.f32 %v275, %v312
    %314 = vst [vmem:[#allocation3] sm:$0x1] %v313
    // Predicated region
    $region30: #{tpu_custom_call.1} parent=1 // pred_check
      %p315 = pneg %p50
    $region31: #{tpu_custom_call.1} parent=1 // pred_check_branch
      %317 = sbr.rel (%p315) target = $region33
    $region32: #{tpu_custom_call.1} parent=1 // pred_region
      %v318 = vld [vmem:[#allocation2] sm:$0x1]
      %v319 = vrcp.pop 128.0
      %v320 = vmul.f32 128.0, %v319
      %v321 = vsub.f32 1.0, %v320
      %v322 = vmul.f32 %v319, %v321
      %v323 = vadd.f32 %v319, %v322
      %vm324 = vweird.f32 %v319
      %v325 = vsel %vm324, %v319, %v323
      %v326 = vmul.f32 %v318, %v325
      %v327 = vld [vmem:[#allocation3] sm:$0x1]
      %v328 = vmul.f32 %v327, %v325
      %v329 = vmul.f32 %v326, %v326
      %v330 = vsub.f32 %v328, %v329
      %v331 = vmax.f32 %v330, 0.0
      %v332 = vld [vmem:[%s2] sm:$0x1]
      %v333 = vadd.f32 %v331, 1e-05
      %v334 = vrsqrt.pop %v333
      %v335 = vmul.f32 %v334, %v333
      %v336 = vmul.f32 %v335, %v334
      %v337 = vmul.f32 0.5, %v336
      %v338 = vsub.f32 1.5, %v337
      %v339 = vmul.f32 %v334, %v338
      %vm340 = vweird.f32 %v333
      %vm341 = vweird.f32 %v334
      %vm342 = vmor %vm340, %vm341
      %v343 = vsel %vm342, %v334, %v339
      %v344 = vmul.f32 %v332, %v343
      %v345 = vld [vmem:[%s3] sm:$0x1]
      %v346 = vmul.f32 %v326, %v344
      %v347 = vsub.f32 %v345, %v346
      %v348 = vld [vmem:[#allocation9] sm:$0xff]
      %v349 = vld [vmem:[#allocation9 + $0x8] sm:$0xff]
      %v350 = vld [vmem:[#allocation9 + $0x10] sm:$0xff]
      %v351 = vld [vmem:[#allocation9 + $0x18] sm:$0xff]
      %v352 = vld [vmem:[#allocation9 + $0x20] sm:$0xff]
      %v353 = vld [vmem:[#allocation9 + $0x28] sm:$0xff]
      %v354 = vld [vmem:[#allocation9 + $0x30] sm:$0xff]
      %v355 = vld [vmem:[#allocation9 + $0x38] sm:$0xff]
      %v356 = vld [vmem:[#allocation9 + $0x40] sm:$0xff]
      %v357 = vld [vmem:[#allocation9 + $0x48] sm:$0xff]
      %v358 = vld [vmem:[#allocation9 + $0x50] sm:$0xff]
      %v359 = vld [vmem:[#allocation9 + $0x58] sm:$0xff]
      %v360 = vld [vmem:[#allocation9 + $0x60] sm:$0xff]
      %v361 = vld [vmem:[#allocation9 + $0x68] sm:$0xff]
      %v362 = vld [vmem:[#allocation9 + $0x70] sm:$0xff]
      %v363 = vld [vmem:[#allocation9 + $0x78] sm:$0xff]
      %v365 = vperm.slane %v344, 0
      %v367 = vmul.f32 %v348, %v365
      %v368 = vmul.f32 %v349, %v365
      %v369 = vmul.f32 %v350, %v365
      %v370 = vmul.f32 %v351, %v365
      %v371 = vmul.f32 %v352, %v365
      %v372 = vmul.f32 %v353, %v365
      %v373 = vmul.f32 %v354, %v365
      %v374 = vmul.f32 %v355, %v365
      %v375 = vmul.f32 %v356, %v365
      %v376 = vmul.f32 %v357, %v365
      %v377 = vmul.f32 %v358, %v365
      %v378 = vmul.f32 %v359, %v365
      %v379 = vmul.f32 %v360, %v365
      %v380 = vmul.f32 %v361, %v365
      %v381 = vmul.f32 %v362, %v365
      %v382 = vmul.f32 %v363, %v365
      %v384 = vperm.slane %v347, 0
      %v386 = vadd.f32 %v367, %v384
      %v387 = vadd.f32 %v368, %v384
      %v388 = vadd.f32 %v369, %v384
      %v389 = vadd.f32 %v370, %v384
      %v390 = vadd.f32 %v371, %v384
      %v391 = vadd.f32 %v372, %v384
      %v392 = vadd.f32 %v373, %v384
      %v393 = vadd.f32 %v374, %v384
      %v394 = vadd.f32 %v375, %v384
      %v395 = vadd.f32 %v376, %v384
      %v396 = vadd.f32 %v377, %v384
      %v397 = vadd.f32 %v378, %v384
      %v398 = vadd.f32 %v379, %v384
      %v399 = vadd.f32 %v380, %v384
      %v400 = vadd.f32 %v381, %v384
      %v401 = vadd.f32 %v382, %v384
      %v402 = vmax.f32 %v386, 0.0
      %v403 = vmax.f32 %v387, 0.0
      %v404 = vmax.f32 %v388, 0.0
      %v405 = vmax.f32 %v389, 0.0
      %v406 = vmax.f32 %v390, 0.0
      %v407 = vmax.f32 %v391, 0.0
      %v408 = vmax.f32 %v392, 0.0
      %v409 = vmax.f32 %v393, 0.0
      %v410 = vmax.f32 %v394, 0.0
      %v411 = vmax.f32 %v395, 0.0
      %v412 = vmax.f32 %v396, 0.0
      %v413 = vmax.f32 %v397, 0.0
      %v414 = vmax.f32 %v398, 0.0
      %v415 = vmax.f32 %v399, 0.0
      %v416 = vmax.f32 %v400, 0.0
      %v417 = vmax.f32 %v401, 0.0
      %418 = vst [vmem:[#allocation9] sm:$0xff] %v402
      %419 = vst [vmem:[#allocation9 + $0x8] sm:$0xff] %v403
      %420 = vst [vmem:[#allocation9 + $0x10] sm:$0xff] %v404
      %421 = vst [vmem:[#allocation9 + $0x18] sm:$0xff] %v405
      %422 = vst [vmem:[#allocation9 + $0x20] sm:$0xff] %v406
      %423 = vst [vmem:[#allocation9 + $0x28] sm:$0xff] %v407
      %424 = vst [vmem:[#allocation9 + $0x30] sm:$0xff] %v408
      %425 = vst [vmem:[#allocation9 + $0x38] sm:$0xff] %v409
      %426 = vst [vmem:[#allocation9 + $0x40] sm:$0xff] %v410
      %427 = vst [vmem:[#allocation9 + $0x48] sm:$0xff] %v411
      %428 = vst [vmem:[#allocation9 + $0x50] sm:$0xff] %v412
      %429 = vst [vmem:[#allocation9 + $0x58] sm:$0xff] %v413
      %430 = vst [vmem:[#allocation9 + $0x60] sm:$0xff] %v414
      %431 = vst [vmem:[#allocation9 + $0x68] sm:$0xff] %v415
      %432 = vst [vmem:[#allocation9 + $0x70] sm:$0xff] %v416
      %433 = vst [vmem:[#allocation9 + $0x78] sm:$0xff] %v417
    $region33: #{tpu_custom_call.1} parent=1 // pred_fallthru
      _
    // Predicated region
    $region34: #{tpu_custom_call.1} parent=1 // pred_check
      _
    $region35: #{tpu_custom_call.1} parent=1 // pred_check_branch
      %435 = sbr.rel (0) target = $region37
    $region36: #{tpu_custom_call.1} parent=1 // pred_region
      %437 = vsyncadd [#allocation6], 0
      %s438 = sshll.u32 [#allocation9], 4
      %s439 = int_to_ptr.vmem [resolvable:$true] %s438
      %s440 = sshll.u32 %s4, 4
      %s441 = int_to_ptr.hbm [resolvable:$true] %s440
      %446 = dma.vmem_to_hbm [thread:$0]  %s439, 2048, %s441, [#allocation6], 128, 128, 8
    $region37: #{tpu_custom_call.1} parent=1 // pred_fallthru
      _
    // Predicated region
    $region38: #{tpu_custom_call.1} parent=1 // pred_check
      _
    $region39: #{tpu_custom_call.1} parent=1 // pred_check_branch
      %448 = sbr.rel (0) target = $region41
    $region40: #{tpu_custom_call.1} parent=1 // pred_region
      %450 = dma.done [#allocation6], 2048
    $region41: #{tpu_custom_call.1} parent=1 // pred_fallthru
      _
    %451 = vsyncpa [#allocation5], 1
    %452 = vsyncpa [#allocation8], 1
    %453 = vsyncpa [#allocation6], 1

</llo_original>
